<compile_context>
chip_gen: v7x
topology: tpu7x:2x2x1
jax: 0.10.0
libtpu: 0.0.40
codegen_flags: <defaults>
</compile_context>

<pallas_src>
import functools
import math

import jax
import jax.numpy as jnp
from jax.experimental import pallas as pl
from jax.experimental.pallas import tpu as pltpu


def _nf_forward_kernel(lo_ref, hi_ref, w1_ref, b1_ref, wst_ref, bst_ref,
                       out_ref, *, num_flows, dim):
    """Whole flow stack + prior log-prob for one batch tile (batch on lanes).

    out layout (sublane axis): [ z_lo (d2) | z_hi (d2) | prior_logprob | log_det ]
    with the batch on the lane axis (TB lanes).
    """
    lo = lo_ref[...].astype(jnp.float32)          # (d2, TB)
    hi = hi_ref[...].astype(jnp.float32)          # (d2, TB)
    d2, tb = lo.shape
    mm_dtype = w1_ref.dtype                       # f32 or bf16 (cast wrapper-side)

    s_total = jnp.zeros((d2, tb), jnp.float32)    # deferred log_det accumulator

    # K is small and static -> unrolled. TODO(synk): lax.fori_loop for large K.
    for k in range(num_flows):
        even = (k % 2 == 0)
        cond = lo if even else hi                 # conditioning half, (d2, TB)
        # conditioner MLP (transposed): (H,d2)@(d2,TB) then fused (2d2,H)@(H,TB)
        h = jnp.tanh(
            jnp.dot(w1_ref[k], cond.astype(mm_dtype),
                    preferred_element_type=jnp.float32) + b1_ref[k])
        st = jnp.dot(wst_ref[k], h.astype(mm_dtype),
                     preferred_element_type=jnp.float32) + bst_ref[k]
        s = st[:d2, :]                            # log-scale, (d2, TB)
        t = st[d2:, :]                            # shift,     (d2, TB)
        if even:
            hi = hi * jnp.exp(s) + t
        else:
            lo = lo * jnp.exp(s) + t
        s_total = s_total + s                     # cheap full-width VPU add

    # Two cross-sublane reduces total (instead of K + 2).
    log_det = jnp.sum(s_total, axis=0, keepdims=True)               # (1, TB)
    sq = jnp.sum(lo * lo + hi * hi, axis=0, keepdims=True)          # (1, TB)
    plp = -0.5 * sq - 0.5 * dim * math.log(2.0 * math.pi)           # (1, TB)

    # Single lane-dense store: z | prior_logprob | log_det.
    out_ref[...] = jnp.concatenate([lo, hi, plp, log_det],
                                   axis=0).astype(out_ref.dtype)


def _num_tensorcores_per_chip():
    """Best-effort TensorCores-per-chip (2 on v7x, else 1)."""
    try:
        info = pltpu.get_tpu_info()
        for attr in ("num_cores", "tensorcores_per_chip", "num_tensorcores"):
            n = getattr(info, attr, None)
            if isinstance(n, int) and 1 <= n <= 8:
                return n
    except Exception:
        pass
    try:
        if "v7" in jax.devices()[0].device_kind.lower():
            return 2
    except Exception:
        pass
    return 1


def _pick_batch_tile(b, num_cores, max_tb=8192):
    """Batch (lane-axis) tile size.

    v5e / v6e (single TensorCore): one maximal tile -- every extra grid step
    is a serial-loop iteration costing ~0.35 us with zero parallelism.
    v7x (2 TensorCores): prefer exactly one large lane-dense tile per core
    (block lane dim must be a multiple of 128 unless it equals the full B).
    max_tb caps per-tile activation VMEM for very large batches.
    """
    if num_cores > 1 and b % (128 * num_cores) == 0:
        tb = b // num_cores
        if tb <= max_tb:
            return tb
        # per-core tile too big: fall through to the capped divisor search.
    elif b <= max_tb:
        return b                       # single maximal tile
    # Largest multiple-of-128 divisor of b not exceeding max_tb.
    tb = (min(b, max_tb) // 128) * 128
    while tb >= 128:
        if b % tb == 0:
            return tb
        tb -= 128
    return b                           # no aligned divisor: whole batch at once


def normalizing_flow_forward(x, params, *, matmul_dtype=jnp.float32):
    """x: (B, D) float32. Returns (z, prior_logprob, log_det) like the nn.Module.

    matmul_dtype=jnp.bfloat16 runs the MXU in its native dtype (valid on
    v5e/v6e/v7x -- only elementwise units lack bf16 and all elementwise math
    here is f32); use a relaxed tolerance, error compounds with the number of
    flows K since activations are re-cast each layer.
    """
    w1, b1, ws, bs, wt, bt = params
    B, D = x.shape
    K, D2, H = w1.shape
    assert D2 * 2 == D

    # --- wrapper-side layout plumbing (free): batch -> lane axis -------------
    # Transposed weights so the kernel computes h = tanh(W1^T @ cond + b1^T);
    # shift/log-scale projections fused into one (K, 2*D2, H) matmul per flow.
    w1t = jnp.transpose(w1, (0, 2, 1))                                  # (K, H, D2)
    wstt = jnp.concatenate([jnp.transpose(ws, (0, 2, 1)),
                            jnp.transpose(wt, (0, 2, 1))], axis=1)      # (K, 2*D2, H)
    b1t = jnp.transpose(b1, (0, 2, 1))                                  # (K, H, 1)
    bstt = jnp.transpose(jnp.concatenate([bs, bt], axis=-1), (0, 2, 1)) # (K, 2*D2, 1)

    # Cast weights once (halves weight DMA/VMEM bytes in bf16); biases stay f32.
    w1c = w1t.astype(matmul_dtype)
    wstc = wstt.astype(matmul_dtype)

    # Split + transpose so the kernel never lane-slices and batch sits on lanes.
    lo_t = x[:, :D2].T                                                  # (D2, B)
    hi_t = x[:, D2:].T                                                  # (D2, B)

    num_cores = _num_tensorcores_per_chip()
    TB = _pick_batch_tile(B, num_cores)
    grid = (B // TB,)

    kernel = functools.partial(_nf_forward_kernel, num_flows=K, dim=D)

    def param_spec(shape):
        # Grid-invariant block: single-buffer it (second pipeline buffer would
        # be pure wasted VMEM since the index never changes).
        return pl.BlockSpec(shape, lambda i: (0,) * len(shape),
                            pipeline_mode=pl.Buffered(1))

    def _nbytes(a):
        return int(a.size) * int(a.dtype.itemsize)

    # Resident VMEM: single-buffered weights/biases + double-buffered IO tiles
    # + in-kernel temporaries (h is the largest), with headroom.
    weight_bytes = _nbytes(w1c) + _nbytes(wstc) + _nbytes(b1t) + _nbytes(bstt)
    io_bytes = 2 * (2 * D2 * TB * 4 + (D + 2) * TB * 4) * 2
    act_bytes = (H + 8 * D2 + 4) * TB * 4
    vmem_limit = int(min(max(32 << 20,
                             weight_bytes + io_bytes + act_bytes + (1 << 20)),
                         64 << 20))

    cost = pl.CostEstimate(
        flops=6 * K * B * H * D2,                 # 2*B*D2*H + 2*B*H*(2*D2) per flow
        transcendentals=K * B * (H + D2),         # tanh + exp per flow
        bytes_accessed=(_nbytes(lo_t) + _nbytes(hi_t) + weight_bytes
                        + B * (D + 2) * 4),
    )

    out = pl.pallas_call(
        kernel,
        out_shape=jax.ShapeDtypeStruct((D + 2, B), jnp.float32),
        grid=grid,
        in_specs=[
            pl.BlockSpec((D2, TB), lambda i: (0, i)),      # lo^T
            pl.BlockSpec((D2, TB), lambda i: (0, i)),      # hi^T
            param_spec((K, H, D2)),                        # W1^T
            param_spec((K, H, 1)),                         # b1^T
            param_spec((K, 2 * D2, H)),                    # fused (Ws|Wt)^T
            param_spec((K, 2 * D2, 1)),                    # fused (bs|bt)^T
        ],
        out_specs=pl.BlockSpec((D + 2, TB), lambda i: (0, i)),
        compiler_params=pltpu.CompilerParams(
            dimension_semantics=("parallel",),
            vmem_limit_bytes=vmem_limit),
        cost_estimate=cost,
    )(lo_t, hi_t, w1c, b1t, wstc, bstt)

    z = out[:D, :].T                                       # (B, D)
    prior_logprob = out[D, :]                              # (B,)
    log_det = out[D + 1, :]                                # (B,)
    return z, prior_logprob, log_det


def _reference_forward(x, params):
    """Pure-JAX reference mirroring the PyTorch flow-stack semantics."""
    w1, b1, ws, bs, wt, bt = params
    K = w1.shape[0]
    D = x.shape[1]
    d2 = D // 2
    lo, hi = x[:, :d2], x[:, d2:]
    log_det = jnp.zeros((x.shape[0],), jnp.float32)
    for k in range(K):
        cond = lo if k % 2 == 0 else hi
        h = jnp.tanh(cond @ w1[k] + b1[k, 0])
        s = h @ ws[k] + bs[k, 0]
        t = h @ wt[k] + bt[k, 0]
        if k % 2 == 0:
            hi = hi * jnp.exp(s) + t
        else:
            lo = lo * jnp.exp(s) + t
        log_det = log_det + jnp.sum(s, axis=1)
    z = jnp.concatenate([lo, hi], axis=1)
    plp = -0.5 * jnp.sum(z * z, axis=1) - 0.5 * D * math.log(2.0 * math.pi)
    return z, plp, log_det


def _init_params(key, num_flows, dim, hidden):
    d2 = dim // 2
    keys = jax.random.split(key, 6)
    scale = 0.1
    w1 = scale * jax.random.normal(keys[0], (num_flows, d2, hidden), jnp.float32)
    b1 = scale * jax.random.normal(keys[1], (num_flows, 1, hidden), jnp.float32)
    ws = scale * jax.random.normal(keys[2], (num_flows, hidden, d2), jnp.float32)
    bs = scale * jax.random.normal(keys[3], (num_flows, 1, d2), jnp.float32)
    wt = scale * jax.random.normal(keys[4], (num_flows, hidden, d2), jnp.float32)
    bt = scale * jax.random.normal(keys[5], (num_flows, 1, d2), jnp.float32)
    return w1, b1, ws, bs, wt, bt


if __name__ == "__main__":
    B, DIM, HIDDEN, NUM_FLOWS = 8, 8, 32, 4

    root = jax.random.PRNGKey(0)
    kx, kp = jax.random.split(root)
    x = jax.random.normal(kx, (B, DIM), jnp.float32)
    params = _init_params(kp, NUM_FLOWS, DIM, HIDDEN)

    z_r, plp_r, ld_r = _reference_forward(x, params)

    # f32 MXU path (tight tolerance vs. reference).
    z, prior_logprob, log_det = normalizing_flow_forward(
        x, params, matmul_dtype=jnp.float32)
    jax.block_until_ready((z, prior_logprob, log_det))
    assert z.shape == (B, DIM) and prior_logprob.shape == (B,) and log_det.shape == (B,)
    assert jnp.allclose(z, z_r, atol=1e-5)
    assert jnp.allclose(prior_logprob, plp_r, atol=1e-5)
    assert jnp.allclose(log_det, ld_r, atol=1e-5)

    # bf16 MXU path (native on v5e/v6e/v7x) with relaxed tolerance.
    zb, plpb, ldb = normalizing_flow_forward(
        x, params, matmul_dtype=jnp.bfloat16)
    jax.block_until_ready((zb, plpb, ldb))
    assert jnp.allclose(zb, z_r, rtol=5e-2, atol=1e-1)
    assert jnp.allclose(plpb, plp_r, rtol=5e-2, atol=1e-1)
    assert jnp.allclose(ldb, ld_r, rtol=5e-2, atol=1e-1)

    print("KERNEL_OK")
</pallas_src>

<mosaic_0001>
module attributes {stable_mosaic.version = 11 : i64} {
  func.func @_nf_forward_kernel(%arg0: i32, %arg1: memref<4x8xf32, #tpu.memory_space<vmem>>, %arg2: memref<4x8xf32, #tpu.memory_space<vmem>>, %arg3: memref<4x32x4xf32, #tpu.memory_space<vmem>>, %arg4: memref<4x32x1xf32, #tpu.memory_space<vmem>>, %arg5: memref<4x8x32xf32, #tpu.memory_space<vmem>>, %arg6: memref<4x8x1xf32, #tpu.memory_space<vmem>>, %arg7: memref<10x8xf32, #tpu.memory_space<vmem>>) attributes {dimension_semantics = [#tpu.dimension_semantics<parallel>], iteration_bounds = array<i64: 1>, scalar_prefetch = 0 : i64, scratch_operands = 0 : i64, tpu.core_type = #tpu.core_type<tc>, window_params = [{transform_indices = @transform_0, window_bounds = array<i64: 4, 8>}, {transform_indices = @transform_1, window_bounds = array<i64: 4, 8>}, {pipeline_mode = #tpu.pipeline_mode<synchronous>, transform_indices = @transform_2, window_bounds = array<i64: 4, 32, 4>}, {pipeline_mode = #tpu.pipeline_mode<synchronous>, transform_indices = @transform_3, window_bounds = array<i64: 4, 32, 1>}, {pipeline_mode = #tpu.pipeline_mode<synchronous>, transform_indices = @transform_4, window_bounds = array<i64: 4, 8, 32>}, {pipeline_mode = #tpu.pipeline_mode<synchronous>, transform_indices = @transform_5, window_bounds = array<i64: 4, 8, 1>}, {transform_indices = @transform_6, window_bounds = array<i64: 10, 8>}]} {
    %c0 = arith.constant 0 : index
    %c0_0 = arith.constant 0 : index
    %0 = vector.load %arg1[%c0, %c0_0] : memref<4x8xf32, #tpu.memory_space<vmem>>, vector<4x8xf32>
    %c0_1 = arith.constant 0 : index
    %c0_2 = arith.constant 0 : index
    %1 = vector.load %arg2[%c0_1, %c0_2] : memref<4x8xf32, #tpu.memory_space<vmem>>, vector<4x8xf32>
    %cst = arith.constant 0.000000e+00 : f32
    %2 = vector.broadcast %cst : f32 to vector<4x8xf32>
    %c0_3 = arith.constant 0 : index
    %c0_4 = arith.constant 0 : index
    %c0_5 = arith.constant 0 : index
    %3 = vector.load %arg3[%c0_3, %c0_4, %c0_5] : memref<4x32x4xf32, #tpu.memory_space<vmem>>, vector<1x32x4xf32>
    %4 = vector.shape_cast %3 : vector<1x32x4xf32> to vector<32x4xf32>
    %cst_6 = arith.constant dense<0.000000e+00> : vector<32x8xf32>
    %5 = tpu.matmul %4, %0, %cst_6 {dimension_numbers = #tpu.dot_dimension_numbers<[1], [0], [0], [1], [0, 0, 1, 1], [], []>} : vector<32x4xf32>, vector<4x8xf32>, vector<32x8xf32> -> vector<32x8xf32>
    %c0_7 = arith.constant 0 : index
    %c0_8 = arith.constant 0 : index
    %c0_9 = arith.constant 0 : index
    %6 = vector.load %arg4[%c0_7, %c0_8, %c0_9] : memref<4x32x1xf32, #tpu.memory_space<vmem>>, vector<1x32x1xf32>
    %7 = vector.shape_cast %6 : vector<1x32x1xf32> to vector<32x1xf32>
    %8 = vector.broadcast %7 : vector<32x1xf32> to vector<32x8xf32>
    %9 = arith.addf %5, %8 : vector<32x8xf32>
    %10 = math.tanh %9 : vector<32x8xf32>
    %c0_10 = arith.constant 0 : index
    %c0_11 = arith.constant 0 : index
    %c0_12 = arith.constant 0 : index
    %11 = vector.load %arg5[%c0_10, %c0_11, %c0_12] : memref<4x8x32xf32, #tpu.memory_space<vmem>>, vector<1x8x32xf32>
    %12 = vector.shape_cast %11 : vector<1x8x32xf32> to vector<8x32xf32>
    %cst_13 = arith.constant dense<0.000000e+00> : vector<8x8xf32>
    %13 = tpu.matmul %12, %10, %cst_13 {dimension_numbers = #tpu.dot_dimension_numbers<[1], [0], [0], [1], [0, 0, 1, 1], [], []>} : vector<8x32xf32>, vector<32x8xf32>, vector<8x8xf32> -> vector<8x8xf32>
    %c0_14 = arith.constant 0 : index
    %c0_15 = arith.constant 0 : index
    %c0_16 = arith.constant 0 : index
    %14 = vector.load %arg6[%c0_14, %c0_15, %c0_16] : memref<4x8x1xf32, #tpu.memory_space<vmem>>, vector<1x8x1xf32>
    %15 = vector.shape_cast %14 : vector<1x8x1xf32> to vector<8x1xf32>
    %16 = vector.broadcast %15 : vector<8x1xf32> to vector<8x8xf32>
    %17 = arith.addf %13, %16 : vector<8x8xf32>
    %18 = vector.extract_strided_slice %17 {offsets = [0, 0], sizes = [4, 8], strides = [1, 1]} : vector<8x8xf32> to vector<4x8xf32>
    %19 = vector.extract_strided_slice %17 {offsets = [4, 0], sizes = [4, 8], strides = [1, 1]} : vector<8x8xf32> to vector<4x8xf32>
    %20 = math.exp %18 : vector<4x8xf32>
    %21 = arith.mulf %1, %20 : vector<4x8xf32>
    %22 = arith.addf %21, %19 : vector<4x8xf32>
    %23 = arith.addf %2, %18 : vector<4x8xf32>
    %c1 = arith.constant 1 : index
    %c0_17 = arith.constant 0 : index
    %c0_18 = arith.constant 0 : index
    %24 = vector.load %arg3[%c1, %c0_17, %c0_18] : memref<4x32x4xf32, #tpu.memory_space<vmem>>, vector<1x32x4xf32>
    %25 = vector.shape_cast %24 : vector<1x32x4xf32> to vector<32x4xf32>
    %cst_19 = arith.constant dense<0.000000e+00> : vector<32x8xf32>
    %26 = tpu.matmul %25, %22, %cst_19 {dimension_numbers = #tpu.dot_dimension_numbers<[1], [0], [0], [1], [0, 0, 1, 1], [], []>} : vector<32x4xf32>, vector<4x8xf32>, vector<32x8xf32> -> vector<32x8xf32>
    %c1_20 = arith.constant 1 : index
    %c0_21 = arith.constant 0 : index
    %c0_22 = arith.constant 0 : index
    %27 = vector.load %arg4[%c1_20, %c0_21, %c0_22] : memref<4x32x1xf32, #tpu.memory_space<vmem>>, vector<1x32x1xf32>
    %28 = vector.shape_cast %27 : vector<1x32x1xf32> to vector<32x1xf32>
    %29 = vector.broadcast %28 : vector<32x1xf32> to vector<32x8xf32>
    %30 = arith.addf %26, %29 : vector<32x8xf32>
    %31 = math.tanh %30 : vector<32x8xf32>
    %c1_23 = arith.constant 1 : index
    %c0_24 = arith.constant 0 : index
    %c0_25 = arith.constant 0 : index
    %32 = vector.load %arg5[%c1_23, %c0_24, %c0_25] : memref<4x8x32xf32, #tpu.memory_space<vmem>>, vector<1x8x32xf32>
    %33 = vector.shape_cast %32 : vector<1x8x32xf32> to vector<8x32xf32>
    %cst_26 = arith.constant dense<0.000000e+00> : vector<8x8xf32>
    %34 = tpu.matmul %33, %31, %cst_26 {dimension_numbers = #tpu.dot_dimension_numbers<[1], [0], [0], [1], [0, 0, 1, 1], [], []>} : vector<8x32xf32>, vector<32x8xf32>, vector<8x8xf32> -> vector<8x8xf32>
    %c1_27 = arith.constant 1 : index
    %c0_28 = arith.constant 0 : index
    %c0_29 = arith.constant 0 : index
    %35 = vector.load %arg6[%c1_27, %c0_28, %c0_29] : memref<4x8x1xf32, #tpu.memory_space<vmem>>, vector<1x8x1xf32>
    %36 = vector.shape_cast %35 : vector<1x8x1xf32> to vector<8x1xf32>
    %37 = vector.broadcast %36 : vector<8x1xf32> to vector<8x8xf32>
    %38 = arith.addf %34, %37 : vector<8x8xf32>
    %39 = vector.extract_strided_slice %38 {offsets = [0, 0], sizes = [4, 8], strides = [1, 1]} : vector<8x8xf32> to vector<4x8xf32>
    %40 = vector.extract_strided_slice %38 {offsets = [4, 0], sizes = [4, 8], strides = [1, 1]} : vector<8x8xf32> to vector<4x8xf32>
    %41 = math.exp %39 : vector<4x8xf32>
    %42 = arith.mulf %0, %41 : vector<4x8xf32>
    %43 = arith.addf %42, %40 : vector<4x8xf32>
    %44 = arith.addf %23, %39 : vector<4x8xf32>
    %c2 = arith.constant 2 : index
    %c0_30 = arith.constant 0 : index
    %c0_31 = arith.constant 0 : index
    %45 = vector.load %arg3[%c2, %c0_30, %c0_31] : memref<4x32x4xf32, #tpu.memory_space<vmem>>, vector<1x32x4xf32>
    %46 = vector.shape_cast %45 : vector<1x32x4xf32> to vector<32x4xf32>
    %cst_32 = arith.constant dense<0.000000e+00> : vector<32x8xf32>
    %47 = tpu.matmul %46, %43, %cst_32 {dimension_numbers = #tpu.dot_dimension_numbers<[1], [0], [0], [1], [0, 0, 1, 1], [], []>} : vector<32x4xf32>, vector<4x8xf32>, vector<32x8xf32> -> vector<32x8xf32>
    %c2_33 = arith.constant 2 : index
    %c0_34 = arith.constant 0 : index
    %c0_35 = arith.constant 0 : index
    %48 = vector.load %arg4[%c2_33, %c0_34, %c0_35] : memref<4x32x1xf32, #tpu.memory_space<vmem>>, vector<1x32x1xf32>
    %49 = vector.shape_cast %48 : vector<1x32x1xf32> to vector<32x1xf32>
    %50 = vector.broadcast %49 : vector<32x1xf32> to vector<32x8xf32>
    %51 = arith.addf %47, %50 : vector<32x8xf32>
    %52 = math.tanh %51 : vector<32x8xf32>
    %c2_36 = arith.constant 2 : index
    %c0_37 = arith.constant 0 : index
    %c0_38 = arith.constant 0 : index
    %53 = vector.load %arg5[%c2_36, %c0_37, %c0_38] : memref<4x8x32xf32, #tpu.memory_space<vmem>>, vector<1x8x32xf32>
    %54 = vector.shape_cast %53 : vector<1x8x32xf32> to vector<8x32xf32>
    %cst_39 = arith.constant dense<0.000000e+00> : vector<8x8xf32>
    %55 = tpu.matmul %54, %52, %cst_39 {dimension_numbers = #tpu.dot_dimension_numbers<[1], [0], [0], [1], [0, 0, 1, 1], [], []>} : vector<8x32xf32>, vector<32x8xf32>, vector<8x8xf32> -> vector<8x8xf32>
    %c2_40 = arith.constant 2 : index
    %c0_41 = arith.constant 0 : index
    %c0_42 = arith.constant 0 : index
    %56 = vector.load %arg6[%c2_40, %c0_41, %c0_42] : memref<4x8x1xf32, #tpu.memory_space<vmem>>, vector<1x8x1xf32>
    %57 = vector.shape_cast %56 : vector<1x8x1xf32> to vector<8x1xf32>
    %58 = vector.broadcast %57 : vector<8x1xf32> to vector<8x8xf32>
    %59 = arith.addf %55, %58 : vector<8x8xf32>
    %60 = vector.extract_strided_slice %59 {offsets = [0, 0], sizes = [4, 8], strides = [1, 1]} : vector<8x8xf32> to vector<4x8xf32>
    %61 = vector.extract_strided_slice %59 {offsets = [4, 0], sizes = [4, 8], strides = [1, 1]} : vector<8x8xf32> to vector<4x8xf32>
    %62 = math.exp %60 : vector<4x8xf32>
    %63 = arith.mulf %22, %62 : vector<4x8xf32>
    %64 = arith.addf %63, %61 : vector<4x8xf32>
    %65 = arith.addf %44, %60 : vector<4x8xf32>
    %c3 = arith.constant 3 : index
    %c0_43 = arith.constant 0 : index
    %c0_44 = arith.constant 0 : index
    %66 = vector.load %arg3[%c3, %c0_43, %c0_44] : memref<4x32x4xf32, #tpu.memory_space<vmem>>, vector<1x32x4xf32>
    %67 = vector.shape_cast %66 : vector<1x32x4xf32> to vector<32x4xf32>
    %cst_45 = arith.constant dense<0.000000e+00> : vector<32x8xf32>
    %68 = tpu.matmul %67, %64, %cst_45 {dimension_numbers = #tpu.dot_dimension_numbers<[1], [0], [0], [1], [0, 0, 1, 1], [], []>} : vector<32x4xf32>, vector<4x8xf32>, vector<32x8xf32> -> vector<32x8xf32>
    %c3_46 = arith.constant 3 : index
    %c0_47 = arith.constant 0 : index
    %c0_48 = arith.constant 0 : index
    %69 = vector.load %arg4[%c3_46, %c0_47, %c0_48] : memref<4x32x1xf32, #tpu.memory_space<vmem>>, vector<1x32x1xf32>
    %70 = vector.shape_cast %69 : vector<1x32x1xf32> to vector<32x1xf32>
    %71 = vector.broadcast %70 : vector<32x1xf32> to vector<32x8xf32>
    %72 = arith.addf %68, %71 : vector<32x8xf32>
    %73 = math.tanh %72 : vector<32x8xf32>
    %c3_49 = arith.constant 3 : index
    %c0_50 = arith.constant 0 : index
    %c0_51 = arith.constant 0 : index
    %74 = vector.load %arg5[%c3_49, %c0_50, %c0_51] : memref<4x8x32xf32, #tpu.memory_space<vmem>>, vector<1x8x32xf32>
    %75 = vector.shape_cast %74 : vector<1x8x32xf32> to vector<8x32xf32>
    %cst_52 = arith.constant dense<0.000000e+00> : vector<8x8xf32>
    %76 = tpu.matmul %75, %73, %cst_52 {dimension_numbers = #tpu.dot_dimension_numbers<[1], [0], [0], [1], [0, 0, 1, 1], [], []>} : vector<8x32xf32>, vector<32x8xf32>, vector<8x8xf32> -> vector<8x8xf32>
    %c3_53 = arith.constant 3 : index
    %c0_54 = arith.constant 0 : index
    %c0_55 = arith.constant 0 : index
    %77 = vector.load %arg6[%c3_53, %c0_54, %c0_55] : memref<4x8x1xf32, #tpu.memory_space<vmem>>, vector<1x8x1xf32>
    %78 = vector.shape_cast %77 : vector<1x8x1xf32> to vector<8x1xf32>
    %79 = vector.broadcast %78 : vector<8x1xf32> to vector<8x8xf32>
    %80 = arith.addf %76, %79 : vector<8x8xf32>
    %81 = vector.extract_strided_slice %80 {offsets = [0, 0], sizes = [4, 8], strides = [1, 1]} : vector<8x8xf32> to vector<4x8xf32>
    %82 = vector.extract_strided_slice %80 {offsets = [4, 0], sizes = [4, 8], strides = [1, 1]} : vector<8x8xf32> to vector<4x8xf32>
    %83 = math.exp %81 : vector<4x8xf32>
    %84 = arith.mulf %43, %83 : vector<4x8xf32>
    %85 = arith.addf %84, %82 : vector<4x8xf32>
    %86 = arith.addf %65, %81 : vector<4x8xf32>
    %cst_56 = arith.constant dense<0.000000e+00> : vector<8xf32>
    %87 = vector.multi_reduction <add>, %86, %cst_56 [0] : vector<4x8xf32> to vector<8xf32>
    %88 = vector.shape_cast %87 : vector<8xf32> to vector<1x8xf32>
    %89 = arith.mulf %85, %85 : vector<4x8xf32>
    %90 = arith.mulf %64, %64 : vector<4x8xf32>
    %91 = arith.addf %89, %90 : vector<4x8xf32>
    %cst_57 = arith.constant dense<0.000000e+00> : vector<8xf32>
    %92 = vector.multi_reduction <add>, %91, %cst_57 [0] : vector<4x8xf32> to vector<8xf32>
    %93 = vector.shape_cast %92 : vector<8xf32> to vector<1x8xf32>
    %cst_58 = arith.constant -5.000000e-01 : f32
    %94 = vector.broadcast %cst_58 : f32 to vector<1x8xf32>
    %95 = arith.mulf %94, %93 : vector<1x8xf32>
    %cst_59 = arith.constant 7.35150814 : f32
    %96 = vector.broadcast %cst_59 : f32 to vector<1x8xf32>
    %97 = arith.subf %95, %96 : vector<1x8xf32>
    %98 = tpu.concatenate %85, %64, %97, %88 in 0 : vector<4x8xf32>, vector<4x8xf32>, vector<1x8xf32>, vector<1x8xf32> -> vector<10x8xf32>
    %c0_60 = arith.constant 0 : index
    %c0_61 = arith.constant 0 : index
    %99 = vector.load %arg7[%c0_60, %c0_61] : memref<10x8xf32, #tpu.memory_space<vmem>>, vector<10x8xf32>
    tpu.vector_store %arg7[%c0_60, %c0_61], %98 {strides = array<i32>} : memref<10x8xf32, #tpu.memory_space<vmem>>, vector<10x8xf32>,
    return
  }
  func.func @transform_0(%arg0: i32) -> (i32, i32) {
    %c0_i32 = arith.constant 0 : i32
    %c0_i32_0 = arith.constant 0 : i32
    return %c0_i32, %arg0 : i32, i32
  }
  func.func @transform_1(%arg0: i32) -> (i32, i32) {
    %c0_i32 = arith.constant 0 : i32
    %c0_i32_0 = arith.constant 0 : i32
    return %c0_i32, %arg0 : i32, i32
  }
  func.func @transform_2(%arg0: i32) -> (i32, i32, i32) {
    %c0_i32 = arith.constant 0 : i32
    %c0_i32_0 = arith.constant 0 : i32
    %c0_i32_1 = arith.constant 0 : i32
    %c0_i32_2 = arith.constant 0 : i32
    return %c0_i32, %c0_i32_0, %c0_i32_1 : i32, i32, i32
  }
  func.func @transform_3(%arg0: i32) -> (i32, i32, i32) {
    %c0_i32 = arith.constant 0 : i32
    %c0_i32_0 = arith.constant 0 : i32
    %c0_i32_1 = arith.constant 0 : i32
    %c0_i32_2 = arith.constant 0 : i32
    return %c0_i32, %c0_i32_0, %c0_i32_1 : i32, i32, i32
  }
  func.func @transform_4(%arg0: i32) -> (i32, i32, i32) {
    %c0_i32 = arith.constant 0 : i32
    %c0_i32_0 = arith.constant 0 : i32
    %c0_i32_1 = arith.constant 0 : i32
    %c0_i32_2 = arith.constant 0 : i32
    return %c0_i32, %c0_i32_0, %c0_i32_1 : i32, i32, i32
  }
  func.func @transform_5(%arg0: i32) -> (i32, i32, i32) {
    %c0_i32 = arith.constant 0 : i32
    %c0_i32_0 = arith.constant 0 : i32
    %c0_i32_1 = arith.constant 0 : i32
    %c0_i32_2 = arith.constant 0 : i32
    return %c0_i32, %c0_i32_0, %c0_i32_1 : i32, i32, i32
  }
  func.func @transform_6(%arg0: i32) -> (i32, i32) {
    %c0_i32 = arith.constant 0 : i32
    %c0_i32_0 = arith.constant 0 : i32
    return %c0_i32, %arg0 : i32, i32
  }
}

</mosaic_0001>

<llo_original>
// kernel: tpu_custom_call.1
$region0: #{tpu_custom_call.1}
  #allocation0 [shape = 'u32[]', space=smem, size = 0x4, offset = 0x4, fixed_abs, tag = 'smem constant byte address 0x4 - core index']
  #allocation1 [shape = 'u32[144,128]{1,0:T(1,128)}', space=vmem, size = 0x12000, scoped, tag = 'internal scratch']
  %s0 = inlined_call_operand.vmem [shape: f32[4,8], index: 0, kind: input, shape index: {}]
  %s1 = inlined_call_operand.vmem [shape: f32[4,8], index: 1, kind: input, shape index: {}]
  %s2 = inlined_call_operand.vmem [shape: f32[4,32,4], index: 2, kind: input, shape index: {}]
  %s3 = inlined_call_operand.vmem [shape: f32[4,32,1], index: 3, kind: input, shape index: {}]
  %s4 = inlined_call_operand.vmem [shape: f32[4,8,32], index: 4, kind: input, shape index: {}]
  %s5 = inlined_call_operand.vmem [shape: f32[4,8,1], index: 5, kind: input, shape index: {}]
  %s6 = inlined_call_operand.vmem [shape: f32[10,8], index: 6, kind: output, shape index: {}]
  %s7 = sld [smem:[#allocation0]]
  $region34: #{tpu_custom_call.1} parent=0
    _
  %s9 = ssub.s32 1, %s7
  %s10 = scalar_select 0, %s9, %s7
  // Predicated region
  $region2: #{tpu_custom_call.1} parent=0 // pred_check
    _
  $region3: #{tpu_custom_call.1} parent=0 // pred_check_branch
    %12 = sbr.rel (0) target = $region5
  $region4: #{tpu_custom_call.1} parent=0 // pred_region
    _
  $region5: #{tpu_custom_call.1} parent=0 // pred_fallthru
    _
  // Predicated region
  $region6: #{tpu_custom_call.1} parent=0 // pred_check
    _
  $region7: #{tpu_custom_call.1} parent=0 // pred_check_branch
    %14 = sbr.rel (0) target = $region9
  $region8: #{tpu_custom_call.1} parent=0 // pred_region
    _
  $region9: #{tpu_custom_call.1} parent=0 // pred_fallthru
    _
  // Predicated region
  $region10: #{tpu_custom_call.1} parent=0 // pred_check
    _
  $region11: #{tpu_custom_call.1} parent=0 // pred_check_branch
    %16 = sbr.rel (0) target = $region13
  $region12: #{tpu_custom_call.1} parent=0 // pred_region
    _
  $region13: #{tpu_custom_call.1} parent=0 // pred_fallthru
    _
  // Predicated region
  $region14: #{tpu_custom_call.1} parent=0 // pred_check
    _
  $region15: #{tpu_custom_call.1} parent=0 // pred_check_branch
    %18 = sbr.rel (0) target = $region17
  $region16: #{tpu_custom_call.1} parent=0 // pred_region
    _
  $region17: #{tpu_custom_call.1} parent=0 // pred_fallthru
    _
  // Predicated region
  $region18: #{tpu_custom_call.1} parent=0 // pred_check
    _
  $region19: #{tpu_custom_call.1} parent=0 // pred_check_branch
    %20 = sbr.rel (0) target = $region21
  $region20: #{tpu_custom_call.1} parent=0 // pred_region
    _
  $region21: #{tpu_custom_call.1} parent=0 // pred_fallthru
    _
  // Predicated region
  $region22: #{tpu_custom_call.1} parent=0 // pred_check
    _
  $region23: #{tpu_custom_call.1} parent=0 // pred_check_branch
    %22 = sbr.rel (0) target = $region25
  $region24: #{tpu_custom_call.1} parent=0 // pred_region
    _
  $region25: #{tpu_custom_call.1} parent=0 // pred_fallthru
    _
  %v23 = vld [vmem:[%s0] sm:$0xf]
  %v24 = vld [vmem:[%s1] sm:$0xf]
  %v25 = vld [vmem:[%s2] sm:$0xff]
  %v26 = vld [vmem:[%s2 + $0x8] sm:$0xff]
  %v27 = vld [vmem:[%s2 + $0x10] sm:$0xff]
  %v28 = vld [vmem:[%s2 + $0x18] sm:$0xff]
  %v29 = vld [vmem:[%s3] sm:$0xff]
  %v30 = vld [vmem:[%s3 + $0x8] sm:$0xff]
  %v31 = vld [vmem:[%s3 + $0x10] sm:$0xff]
  %v32 = vld [vmem:[%s3 + $0x18] sm:$0xff]
  %34 = vset.pattern.permute.xlu0 0
  %35 = vperm.xlu0 %34, %v29
  %v36 = vpop.permute.xlu0 %35
  %39 = vset.pattern.permute.xlu0 0
  %40 = vperm.xlu0 %39, %v30
  %v41 = vpop.permute.xlu0 %40
  %44 = vset.pattern.permute.xlu0 0
  %45 = vperm.xlu0 %44, %v31
  %v46 = vpop.permute.xlu0 %45
  %49 = vset.pattern.permute.xlu0 0
  %50 = vperm.xlu0 %49, %v32
  %v51 = vpop.permute.xlu0 %50
  %vm53 = vcmask 31744
  %v55 = vsel %vm53, %v25, 0
  %v58 = vsel %vm53, %v26, 0
  %v61 = vsel %vm53, %v27, 0
  %v64 = vsel %vm53, %v28, 0
  %vm66 = vcmask 1043456
  %v68 = vsel %vm66, %v23, 0
  %70 = vmatprep.subr.mxu0 0.0
  %71 = vmatpush1.msra.mxu0 %v68
  %72 = vmatprep.subr.mxu0 0.0
  %73 = vmatpush1.msra.mxu0 0.0
  %74 = vmatprep.subr.mxu0 0.0
  %75 = vmatpush1.msra.mxu0 0.0
  %76 = vmatprep.subr.mxu0 0.0
  %77 = vmatpush1.msra.mxu0 0.0
  %78 = vmatprep.subr.mxu0 0.0
  %79 = vmatpush1.msra.mxu0 0.0
  %80 = vmatprep.subr.mxu0 0.0
  %81 = vmatpush1.msra.mxu0 0.0
  %82 = vmatprep.subr.mxu0 0.0
  %83 = vmatpush1.msra.mxu0 0.0
  %84 = vmatprep.subr.mxu0 0.0
  %85 = vmatpush1.msra.mxu0 0.0
  %86 = vmatprep.subr.mxu0 0.0
  %87 = vmatpush1.msra.mxu0 0.0
  %88 = vmatprep.subr.mxu0 0.0
  %89 = vmatpush1.msra.mxu0 0.0
  %90 = vmatprep.subr.mxu0 0.0
  %91 = vmatpush1.msra.mxu0 0.0
  %92 = vmatprep.subr.mxu0 0.0
  %93 = vmatpush1.msra.mxu0 0.0
  %94 = vmatprep.subr.mxu0 0.0
  %95 = vmatpush1.msra.mxu0 0.0
  %96 = vmatprep.subr.mxu0 0.0
  %97 = vmatpush1.msra.mxu0 0.0
  %98 = vmatprep.subr.mxu0 0.0
  %99 = vmatpush1.msra.mxu0 0.0
  %100 = vmatprep.subr.mxu0 0.0
  %101 = vmatpush1.msra.mxu0 0.0
  %102 = vmatprep.subr.mxu0 0.0
  %103 = vmatpush1.msra.mxu0 0.0
  %104 = vmatprep.subr.mxu0 0.0
  %105 = vmatpush1.msra.mxu0 0.0
  %106 = vmatprep.subr.mxu0 0.0
  %107 = vmatpush1.msra.mxu0 0.0
  %108 = vmatprep.subr.mxu0 0.0
  %109 = vmatpush1.msra.mxu0 0.0
  %110 = vmatprep.subr.mxu0 0.0
  %111 = vmatpush1.msra.mxu0 0.0
  %112 = vmatprep.subr.mxu0 0.0
  %113 = vmatpush1.msra.mxu0 0.0
  %114 = vmatprep.subr.mxu0 0.0
  %115 = vmatpush1.msra.mxu0 0.0
  %116 = vmatprep.subr.mxu0 0.0
  %117 = vmatpush1.msra.mxu0 0.0
  %118 = vmatprep.subr.mxu0 0.0
  %119 = vmatpush1.msra.mxu0 0.0
  %120 = vmatprep.subr.mxu0 0.0
  %121 = vmatpush1.msra.mxu0 0.0
  %122 = vmatprep.subr.mxu0 0.0
  %123 = vmatpush1.msra.mxu0 0.0
  %124 = vmatprep.subr.mxu0 0.0
  %125 = vmatpush1.msra.mxu0 0.0
  %126 = vmatprep.subr.mxu0 0.0
  %127 = vmatpush1.msra.mxu0 0.0
  %128 = vmatprep.subr.mxu0 0.0
  %129 = vmatpush1.msra.mxu0 0.0
  %130 = vmatprep.subr.mxu0 0.0
  %131 = vmatpush1.msra.mxu0 0.0
  %132 = vmatprep.subr.mxu0 0.0
  %133 = vmatpush1.msra.mxu0 0.0
  %134 = vmatprep.mubr.f32.mxu0 0.0
  %135 = vmatmul.mubr.f32.gmra.mrb[0].mxu0 %v55
  %v136 = vpop.f32.mrb[0].mxu0
  %v137 = vadd.f32 %v36, %v136
  %v138 = vpop.f32.mrb[0].mxu0
  %139 = vmatprep.mubr.f32.mxu0 0.0
  %140 = vmatmul.mubr.f32.gmra.mrb[0].mxu0 %v58
  %v141 = vpop.f32.mrb[0].mxu0
  %v142 = vadd.f32 %v41, %v141
  %v143 = vpop.f32.mrb[0].mxu0
  %144 = vmatprep.mubr.f32.mxu0 0.0
  %145 = vmatmul.mubr.f32.gmra.mrb[0].mxu0 %v61
  %v146 = vpop.f32.mrb[0].mxu0
  %v147 = vadd.f32 %v46, %v146
  %v148 = vpop.f32.mrb[0].mxu0
  %149 = vmatprep.mubr.f32.mxu0 0.0
  %150 = vmatmul.mubr.f32.gmra.mrb[0].mxu0 %v64
  %v151 = vpop.f32.mrb[0].mxu0
  %v152 = vadd.f32 %v51, %v151
  %v153 = vpop.f32.mrb[0].mxu0
  %154 = vdwg.mxu0
  %v155 = vtanh.pop %v137
  %v156 = vtanh.pop %v142
  %v157 = vtanh.pop %v147
  %v158 = vtanh.pop %v152
  %v159 = vld [vmem:[%s4] sm:$0xff]
  %v160 = vld [vmem:[%s5] sm:$0xff]
  %162 = vset.pattern.permute.xlu0 0
  %163 = vperm.xlu0 %162, %v160
  %v164 = vpop.permute.xlu0 %163
  %vm166 = vcmask 261120
  %v168 = vsel %vm166, %v159, 0
  %170 = vmatprep.subr.mxu0 0.0
  %171 = vmatpush1.msra.mxu0 %v155
  %172 = vmatprep.subr.mxu0 0.0
  %173 = vmatpush1.msra.mxu0 %v156
  %174 = vmatprep.subr.mxu0 0.0
  %175 = vmatpush1.msra.mxu0 %v157
  %176 = vmatprep.subr.mxu0 0.0
  %177 = vmatpush1.msra.mxu0 %v158
  %178 = vmatprep.subr.mxu0 0.0
  %179 = vmatpush1.msra.mxu0 0.0
  %180 = vmatprep.subr.mxu0 0.0
  %181 = vmatpush1.msra.mxu0 0.0
  %182 = vmatprep.subr.mxu0 0.0
  %183 = vmatpush1.msra.mxu0 0.0
  %184 = vmatprep.subr.mxu0 0.0
  %185 = vmatpush1.msra.mxu0 0.0
  %186 = vmatprep.subr.mxu0 0.0
  %187 = vmatpush1.msra.mxu0 0.0
  %188 = vmatprep.subr.mxu0 0.0
  %189 = vmatpush1.msra.mxu0 0.0
  %190 = vmatprep.subr.mxu0 0.0
  %191 = vmatpush1.msra.mxu0 0.0
  %192 = vmatprep.subr.mxu0 0.0
  %193 = vmatpush1.msra.mxu0 0.0
  %194 = vmatprep.subr.mxu0 0.0
  %195 = vmatpush1.msra.mxu0 0.0
  %196 = vmatprep.subr.mxu0 0.0
  %197 = vmatpush1.msra.mxu0 0.0
  %198 = vmatprep.subr.mxu0 0.0
  %199 = vmatpush1.msra.mxu0 0.0
  %200 = vmatprep.subr.mxu0 0.0
  %201 = vmatpush1.msra.mxu0 0.0
  %202 = vmatprep.subr.mxu0 0.0
  %203 = vmatpush1.msra.mxu0 0.0
  %204 = vmatprep.subr.mxu0 0.0
  %205 = vmatpush1.msra.mxu0 0.0
  %206 = vmatprep.subr.mxu0 0.0
  %207 = vmatpush1.msra.mxu0 0.0
  %208 = vmatprep.subr.mxu0 0.0
  %209 = vmatpush1.msra.mxu0 0.0
  %210 = vmatprep.subr.mxu0 0.0
  %211 = vmatpush1.msra.mxu0 0.0
  %212 = vmatprep.subr.mxu0 0.0
  %213 = vmatpush1.msra.mxu0 0.0
  %214 = vmatprep.subr.mxu0 0.0
  %215 = vmatpush1.msra.mxu0 0.0
  %216 = vmatprep.subr.mxu0 0.0
  %217 = vmatpush1.msra.mxu0 0.0
  %218 = vmatprep.subr.mxu0 0.0
  %219 = vmatpush1.msra.mxu0 0.0
  %220 = vmatprep.subr.mxu0 0.0
  %221 = vmatpush1.msra.mxu0 0.0
  %222 = vmatprep.subr.mxu0 0.0
  %223 = vmatpush1.msra.mxu0 0.0
  %224 = vmatprep.subr.mxu0 0.0
  %225 = vmatpush1.msra.mxu0 0.0
  %226 = vmatprep.subr.mxu0 0.0
  %227 = vmatpush1.msra.mxu0 0.0
  %228 = vmatprep.subr.mxu0 0.0
  %229 = vmatpush1.msra.mxu0 0.0
  %230 = vmatprep.subr.mxu0 0.0
  %231 = vmatpush1.msra.mxu0 0.0
  %232 = vmatprep.subr.mxu0 0.0
  %233 = vmatpush1.msra.mxu0 0.0
  %234 = vmatprep.mubr.f32.mxu0 0.0
  %235 = vmatmul.mubr.f32.gmra.mrb[0].mxu0 %v168
  %v236 = vpop.f32.mrb[0].mxu0
  %v237 = vadd.f32 %v164, %v236
  %v238 = vpop.f32.mrb[0].mxu0
  %239 = vdwg.mxu0
  %v240 = vmul.f32 %v237, 1.442695
  %v241 = vpow.pop %v240
  %v242 = vmul.f32 %v24, %v241
  %v244 = vrot.slane %v237, 4
  %v246 = vadd.f32 %v242, %v244
  %v247 = vadd.f32 %v237, 0.0
  %s248 = scalar_lea.vmem %s2, 32
  %v249 = vld [vmem:[%s248] sm:$0xff]
  %v250 = vld [vmem:[%s248 + $0x8] sm:$0xff]
  %v251 = vld [vmem:[%s248 + $0x10] sm:$0xff]
  %v252 = vld [vmem:[%s248 + $0x18] sm:$0xff]
  %s253 = scalar_lea.vmem %s3, 32
  %v254 = vld [vmem:[%s253] sm:$0xff]
  %v255 = vld [vmem:[%s253 + $0x8] sm:$0xff]
  %v256 = vld [vmem:[%s253 + $0x10] sm:$0xff]
  %v257 = vld [vmem:[%s253 + $0x18] sm:$0xff]
  %259 = vset.pattern.permute.xlu0 0
  %260 = vperm.xlu0 %259, %v254
  %v261 = vpop.permute.xlu0 %260
  %264 = vset.pattern.permute.xlu0 0
  %265 = vperm.xlu0 %264, %v255
  %v266 = vpop.permute.xlu0 %265
  %269 = vset.pattern.permute.xlu0 0
  %270 = vperm.xlu0 %269, %v256
  %v271 = vpop.permute.xlu0 %270
  %274 = vset.pattern.permute.xlu0 0
  %275 = vperm.xlu0 %274, %v257
  %v276 = vpop.permute.xlu0 %275
  %v279 = vsel %vm53, %v249, 0
  %v282 = vsel %vm53, %v250, 0
  %v285 = vsel %vm53, %v251, 0
  %v288 = vsel %vm53, %v252, 0
  %v291 = vsel %vm66, %v246, 0
  %293 = vmatprep.subr.mxu0 0.0
  %294 = vmatpush1.msra.mxu0 %v291
  %295 = vmatprep.subr.mxu0 0.0
  %296 = vmatpush1.msra.mxu0 0.0
  %297 = vmatprep.subr.mxu0 0.0
  %298 = vmatpush1.msra.mxu0 0.0
  %299 = vmatprep.subr.mxu0 0.0
  %300 = vmatpush1.msra.mxu0 0.0
  %301 = vmatprep.subr.mxu0 0.0
  %302 = vmatpush1.msra.mxu0 0.0
  %303 = vmatprep.subr.mxu0 0.0
  %304 = vmatpush1.msra.mxu0 0.0
  %305 = vmatprep.subr.mxu0 0.0
  %306 = vmatpush1.msra.mxu0 0.0
  %307 = vmatprep.subr.mxu0 0.0
  %308 = vmatpush1.msra.mxu0 0.0
  %309 = vmatprep.subr.mxu0 0.0
  %310 = vmatpush1.msra.mxu0 0.0
  %311 = vmatprep.subr.mxu0 0.0
  %312 = vmatpush1.msra.mxu0 0.0
  %313 = vmatprep.subr.mxu0 0.0
  %314 = vmatpush1.msra.mxu0 0.0
  %315 = vmatprep.subr.mxu0 0.0
  %316 = vmatpush1.msra.mxu0 0.0
  %317 = vmatprep.subr.mxu0 0.0
  %318 = vmatpush1.msra.mxu0 0.0
  %319 = vmatprep.subr.mxu0 0.0
  %320 = vmatpush1.msra.mxu0 0.0
  %321 = vmatprep.subr.mxu0 0.0
  %322 = vmatpush1.msra.mxu0 0.0
  %323 = vmatprep.subr.mxu0 0.0
  %324 = vmatpush1.msra.mxu0 0.0
  %325 = vmatprep.subr.mxu0 0.0
  %326 = vmatpush1.msra.mxu0 0.0
  %327 = vmatprep.subr.mxu0 0.0
  %328 = vmatpush1.msra.mxu0 0.0
  %329 = vmatprep.subr.mxu0 0.0
  %330 = vmatpush1.msra.mxu0 0.0
  %331 = vmatprep.subr.mxu0 0.0
  %332 = vmatpush1.msra.mxu0 0.0
  %333 = vmatprep.subr.mxu0 0.0
  %334 = vmatpush1.msra.mxu0 0.0
  %335 = vmatprep.subr.mxu0 0.0
  %336 = vmatpush1.msra.mxu0 0.0
  %337 = vmatprep.subr.mxu0 0.0
  %338 = vmatpush1.msra.mxu0 0.0
  %339 = vmatprep.subr.mxu0 0.0
  %340 = vmatpush1.msra.mxu0 0.0
  %341 = vmatprep.subr.mxu0 0.0
  %342 = vmatpush1.msra.mxu0 0.0
  %343 = vmatprep.subr.mxu0 0.0
  %344 = vmatpush1.msra.mxu0 0.0
  %345 = vmatprep.subr.mxu0 0.0
  %346 = vmatpush1.msra.mxu0 0.0
  %347 = vmatprep.subr.mxu0 0.0
  %348 = vmatpush1.msra.mxu0 0.0
  %349 = vmatprep.subr.mxu0 0.0
  %350 = vmatpush1.msra.mxu0 0.0
  %351 = vmatprep.subr.mxu0 0.0
  %352 = vmatpush1.msra.mxu0 0.0
  %353 = vmatprep.subr.mxu0 0.0
  %354 = vmatpush1.msra.mxu0 0.0
  %355 = vmatprep.subr.mxu0 0.0
  %356 = vmatpush1.msra.mxu0 0.0
  %357 = vmatprep.mubr.f32.mxu0 0.0
  %358 = vmatmul.mubr.f32.gmra.mrb[0].mxu0 %v279
  %v359 = vpop.f32.mrb[0].mxu0
  %v360 = vadd.f32 %v261, %v359
  %v361 = vpop.f32.mrb[0].mxu0
  %362 = vmatprep.mubr.f32.mxu0 0.0
  %363 = vmatmul.mubr.f32.gmra.mrb[0].mxu0 %v282
  %v364 = vpop.f32.mrb[0].mxu0
  %v365 = vadd.f32 %v266, %v364
  %v366 = vpop.f32.mrb[0].mxu0
  %367 = vmatprep.mubr.f32.mxu0 0.0
  %368 = vmatmul.mubr.f32.gmra.mrb[0].mxu0 %v285
  %v369 = vpop.f32.mrb[0].mxu0
  %v370 = vadd.f32 %v271, %v369
  %v371 = vpop.f32.mrb[0].mxu0
  %372 = vmatprep.mubr.f32.mxu0 0.0
  %373 = vmatmul.mubr.f32.gmra.mrb[0].mxu0 %v288
  %v374 = vpop.f32.mrb[0].mxu0
  %v375 = vadd.f32 %v276, %v374
  %v376 = vpop.f32.mrb[0].mxu0
  %377 = vdwg.mxu0
  %v378 = vtanh.pop %v360
  %v379 = vtanh.pop %v365
  %v380 = vtanh.pop %v370
  %v381 = vtanh.pop %v375
  %s382 = scalar_lea.vmem %s4, 8
  %v383 = vld [vmem:[%s382] sm:$0xff]
  %s384 = scalar_lea.vmem %s5, 8
  %v385 = vld [vmem:[%s384] sm:$0xff]
  %387 = vset.pattern.permute.xlu0 0
  %388 = vperm.xlu0 %387, %v385
  %v389 = vpop.permute.xlu0 %388
  %v392 = vsel %vm166, %v383, 0
  %394 = vmatprep.subr.mxu0 0.0
  %395 = vmatpush1.msra.mxu0 %v378
  %396 = vmatprep.subr.mxu0 0.0
  %397 = vmatpush1.msra.mxu0 %v379
  %398 = vmatprep.subr.mxu0 0.0
  %399 = vmatpush1.msra.mxu0 %v380
  %400 = vmatprep.subr.mxu0 0.0
  %401 = vmatpush1.msra.mxu0 %v381
  %402 = vmatprep.subr.mxu0 0.0
  %403 = vmatpush1.msra.mxu0 0.0
  %404 = vmatprep.subr.mxu0 0.0
  %405 = vmatpush1.msra.mxu0 0.0
  %406 = vmatprep.subr.mxu0 0.0
  %407 = vmatpush1.msra.mxu0 0.0
  %408 = vmatprep.subr.mxu0 0.0
  %409 = vmatpush1.msra.mxu0 0.0
  %410 = vmatprep.subr.mxu0 0.0
  %411 = vmatpush1.msra.mxu0 0.0
  %412 = vmatprep.subr.mxu0 0.0
  %413 = vmatpush1.msra.mxu0 0.0
  %414 = vmatprep.subr.mxu0 0.0
  %415 = vmatpush1.msra.mxu0 0.0
  %416 = vmatprep.subr.mxu0 0.0
  %417 = vmatpush1.msra.mxu0 0.0
  %418 = vmatprep.subr.mxu0 0.0
  %419 = vmatpush1.msra.mxu0 0.0
  %420 = vmatprep.subr.mxu0 0.0
  %421 = vmatpush1.msra.mxu0 0.0
  %422 = vmatprep.subr.mxu0 0.0
  %423 = vmatpush1.msra.mxu0 0.0
  %424 = vmatprep.subr.mxu0 0.0
  %425 = vmatpush1.msra.mxu0 0.0
  %426 = vmatprep.subr.mxu0 0.0
  %427 = vmatpush1.msra.mxu0 0.0
  %428 = vmatprep.subr.mxu0 0.0
  %429 = vmatpush1.msra.mxu0 0.0
  %430 = vmatprep.subr.mxu0 0.0
  %431 = vmatpush1.msra.mxu0 0.0
  %432 = vmatprep.subr.mxu0 0.0
  %433 = vmatpush1.msra.mxu0 0.0
  %434 = vmatprep.subr.mxu0 0.0
  %435 = vmatpush1.msra.mxu0 0.0
  %436 = vmatprep.subr.mxu0 0.0
  %437 = vmatpush1.msra.mxu0 0.0
  %438 = vmatprep.subr.mxu0 0.0
  %439 = vmatpush1.msra.mxu0 0.0
  %440 = vmatprep.subr.mxu0 0.0
  %441 = vmatpush1.msra.mxu0 0.0
  %442 = vmatprep.subr.mxu0 0.0
  %443 = vmatpush1.msra.mxu0 0.0
  %444 = vmatprep.subr.mxu0 0.0
  %445 = vmatpush1.msra.mxu0 0.0
  %446 = vmatprep.subr.mxu0 0.0
  %447 = vmatpush1.msra.mxu0 0.0
  %448 = vmatprep.subr.mxu0 0.0
  %449 = vmatpush1.msra.mxu0 0.0
  %450 = vmatprep.subr.mxu0 0.0
  %451 = vmatpush1.msra.mxu0 0.0
  %452 = vmatprep.subr.mxu0 0.0
  %453 = vmatpush1.msra.mxu0 0.0
  %454 = vmatprep.subr.mxu0 0.0
  %455 = vmatpush1.msra.mxu0 0.0
  %456 = vmatprep.subr.mxu0 0.0
  %457 = vmatpush1.msra.mxu0 0.0
  %458 = vmatprep.mubr.f32.mxu0 0.0
  %459 = vmatmul.mubr.f32.gmra.mrb[0].mxu0 %v392
  %v460 = vpop.f32.mrb[0].mxu0
  %v461 = vadd.f32 %v389, %v460
  %v462 = vpop.f32.mrb[0].mxu0
  %463 = vdwg.mxu0
  %v464 = vmul.f32 %v461, 1.442695
  %v465 = vpow.pop %v464
  %v466 = vmul.f32 %v23, %v465
  %v468 = vrot.slane %v461, 4
  %v470 = vadd.f32 %v466, %v468
  %v471 = vadd.f32 %v247, %v461
  %s472 = scalar_lea.vmem %s2, 64
  %v473 = vld [vmem:[%s472] sm:$0xff]
  %v474 = vld [vmem:[%s472 + $0x8] sm:$0xff]
  %v475 = vld [vmem:[%s472 + $0x10] sm:$0xff]
  %v476 = vld [vmem:[%s472 + $0x18] sm:$0xff]
  %s477 = scalar_lea.vmem %s3, 64
  %v478 = vld [vmem:[%s477] sm:$0xff]
  %v479 = vld [vmem:[%s477 + $0x8] sm:$0xff]
  %v480 = vld [vmem:[%s477 + $0x10] sm:$0xff]
  %v481 = vld [vmem:[%s477 + $0x18] sm:$0xff]
  %483 = vset.pattern.permute.xlu0 0
  %484 = vperm.xlu0 %483, %v478
  %v485 = vpop.permute.xlu0 %484
  %488 = vset.pattern.permute.xlu0 0
  %489 = vperm.xlu0 %488, %v479
  %v490 = vpop.permute.xlu0 %489
  %493 = vset.pattern.permute.xlu0 0
  %494 = vperm.xlu0 %493, %v480
  %v495 = vpop.permute.xlu0 %494
  %498 = vset.pattern.permute.xlu0 0
  %499 = vperm.xlu0 %498, %v481
  %v500 = vpop.permute.xlu0 %499
  %v503 = vsel %vm53, %v473, 0
  %v506 = vsel %vm53, %v474, 0
  %v509 = vsel %vm53, %v475, 0
  %v512 = vsel %vm53, %v476, 0
  %v515 = vsel %vm66, %v470, 0
  %517 = vmatprep.subr.mxu0 0.0
  %518 = vmatpush1.msra.mxu0 %v515
  %519 = vmatprep.subr.mxu0 0.0
  %520 = vmatpush1.msra.mxu0 0.0
  %521 = vmatprep.subr.mxu0 0.0
  %522 = vmatpush1.msra.mxu0 0.0
  %523 = vmatprep.subr.mxu0 0.0
  %524 = vmatpush1.msra.mxu0 0.0
  %525 = vmatprep.subr.mxu0 0.0
  %526 = vmatpush1.msra.mxu0 0.0
  %527 = vmatprep.subr.mxu0 0.0
  %528 = vmatpush1.msra.mxu0 0.0
  %529 = vmatprep.subr.mxu0 0.0
  %530 = vmatpush1.msra.mxu0 0.0
  %531 = vmatprep.subr.mxu0 0.0
  %532 = vmatpush1.msra.mxu0 0.0
  %533 = vmatprep.subr.mxu0 0.0
  %534 = vmatpush1.msra.mxu0 0.0
  %535 = vmatprep.subr.mxu0 0.0
  %536 = vmatpush1.msra.mxu0 0.0
  %537 = vmatprep.subr.mxu0 0.0
  %538 = vmatpush1.msra.mxu0 0.0
  %539 = vmatprep.subr.mxu0 0.0
  %540 = vmatpush1.msra.mxu0 0.0
  %541 = vmatprep.subr.mxu0 0.0
  %542 = vmatpush1.msra.mxu0 0.0
  %543 = vmatprep.subr.mxu0 0.0
  %544 = vmatpush1.msra.mxu0 0.0
  %545 = vmatprep.subr.mxu0 0.0
  %546 = vmatpush1.msra.mxu0 0.0
  %547 = vmatprep.subr.mxu0 0.0
  %548 = vmatpush1.msra.mxu0 0.0
  %549 = vmatprep.subr.mxu0 0.0
  %550 = vmatpush1.msra.mxu0 0.0
  %551 = vmatprep.subr.mxu0 0.0
  %552 = vmatpush1.msra.mxu0 0.0
  %553 = vmatprep.subr.mxu0 0.0
  %554 = vmatpush1.msra.mxu0 0.0
  %555 = vmatprep.subr.mxu0 0.0
  %556 = vmatpush1.msra.mxu0 0.0
  %557 = vmatprep.subr.mxu0 0.0
  %558 = vmatpush1.msra.mxu0 0.0
  %559 = vmatprep.subr.mxu0 0.0
  %560 = vmatpush1.msra.mxu0 0.0
  %561 = vmatprep.subr.mxu0 0.0
  %562 = vmatpush1.msra.mxu0 0.0
  %563 = vmatprep.subr.mxu0 0.0
  %564 = vmatpush1.msra.mxu0 0.0
  %565 = vmatprep.subr.mxu0 0.0
  %566 = vmatpush1.msra.mxu0 0.0
  %567 = vmatprep.subr.mxu0 0.0
  %568 = vmatpush1.msra.mxu0 0.0
  %569 = vmatprep.subr.mxu0 0.0
  %570 = vmatpush1.msra.mxu0 0.0
  %571 = vmatprep.subr.mxu0 0.0
  %572 = vmatpush1.msra.mxu0 0.0
  %573 = vmatprep.subr.mxu0 0.0
  %574 = vmatpush1.msra.mxu0 0.0
  %575 = vmatprep.subr.mxu0 0.0
  %576 = vmatpush1.msra.mxu0 0.0
  %577 = vmatprep.subr.mxu0 0.0
  %578 = vmatpush1.msra.mxu0 0.0
  %579 = vmatprep.subr.mxu0 0.0
  %580 = vmatpush1.msra.mxu0 0.0
  %581 = vmatprep.mubr.f32.mxu0 0.0
  %582 = vmatmul.mubr.f32.gmra.mrb[0].mxu0 %v503
  %v583 = vpop.f32.mrb[0].mxu0
  %v584 = vadd.f32 %v485, %v583
  %v585 = vpop.f32.mrb[0].mxu0
  %586 = vmatprep.mubr.f32.mxu0 0.0
  %587 = vmatmul.mubr.f32.gmra.mrb[0].mxu0 %v506
  %v588 = vpop.f32.mrb[0].mxu0
  %v589 = vadd.f32 %v490, %v588
  %v590 = vpop.f32.mrb[0].mxu0
  %591 = vmatprep.mubr.f32.mxu0 0.0
  %592 = vmatmul.mubr.f32.gmra.mrb[0].mxu0 %v509
  %v593 = vpop.f32.mrb[0].mxu0
  %v594 = vadd.f32 %v495, %v593
  %v595 = vpop.f32.mrb[0].mxu0
  %596 = vmatprep.mubr.f32.mxu0 0.0
  %597 = vmatmul.mubr.f32.gmra.mrb[0].mxu0 %v512
  %v598 = vpop.f32.mrb[0].mxu0
  %v599 = vadd.f32 %v500, %v598
  %v600 = vpop.f32.mrb[0].mxu0
  %601 = vdwg.mxu0
  %v602 = vtanh.pop %v584
  %v603 = vtanh.pop %v589
  %v604 = vtanh.pop %v594
  %v605 = vtanh.pop %v599
  %s606 = scalar_lea.vmem %s4, 16
  %v607 = vld [vmem:[%s606] sm:$0xff]
  %s608 = scalar_lea.vmem %s5, 16
  %v609 = vld [vmem:[%s608] sm:$0xff]
  %611 = vset.pattern.permute.xlu0 0
  %612 = vperm.xlu0 %611, %v609
  %v613 = vpop.permute.xlu0 %612
  %v616 = vsel %vm166, %v607, 0
  %618 = vmatprep.subr.mxu0 0.0
  %619 = vmatpush1.msra.mxu0 %v602
  %620 = vmatprep.subr.mxu0 0.0
  %621 = vmatpush1.msra.mxu0 %v603
  %622 = vmatprep.subr.mxu0 0.0
  %623 = vmatpush1.msra.mxu0 %v604
  %624 = vmatprep.subr.mxu0 0.0
  %625 = vmatpush1.msra.mxu0 %v605
  %626 = vmatprep.subr.mxu0 0.0
  %627 = vmatpush1.msra.mxu0 0.0
  %628 = vmatprep.subr.mxu0 0.0
  %629 = vmatpush1.msra.mxu0 0.0
  %630 = vmatprep.subr.mxu0 0.0
  %631 = vmatpush1.msra.mxu0 0.0
  %632 = vmatprep.subr.mxu0 0.0
  %633 = vmatpush1.msra.mxu0 0.0
  %634 = vmatprep.subr.mxu0 0.0
  %635 = vmatpush1.msra.mxu0 0.0
  %636 = vmatprep.subr.mxu0 0.0
  %637 = vmatpush1.msra.mxu0 0.0
  %638 = vmatprep.subr.mxu0 0.0
  %639 = vmatpush1.msra.mxu0 0.0
  %640 = vmatprep.subr.mxu0 0.0
  %641 = vmatpush1.msra.mxu0 0.0
  %642 = vmatprep.subr.mxu0 0.0
  %643 = vmatpush1.msra.mxu0 0.0
  %644 = vmatprep.subr.mxu0 0.0
  %645 = vmatpush1.msra.mxu0 0.0
  %646 = vmatprep.subr.mxu0 0.0
  %647 = vmatpush1.msra.mxu0 0.0
  %648 = vmatprep.subr.mxu0 0.0
  %649 = vmatpush1.msra.mxu0 0.0
  %650 = vmatprep.subr.mxu0 0.0
  %651 = vmatpush1.msra.mxu0 0.0
  %652 = vmatprep.subr.mxu0 0.0
  %653 = vmatpush1.msra.mxu0 0.0
  %654 = vmatprep.subr.mxu0 0.0
  %655 = vmatpush1.msra.mxu0 0.0
  %656 = vmatprep.subr.mxu0 0.0
  %657 = vmatpush1.msra.mxu0 0.0
  %658 = vmatprep.subr.mxu0 0.0
  %659 = vmatpush1.msra.mxu0 0.0
  %660 = vmatprep.subr.mxu0 0.0
  %661 = vmatpush1.msra.mxu0 0.0
  %662 = vmatprep.subr.mxu0 0.0
  %663 = vmatpush1.msra.mxu0 0.0
  %664 = vmatprep.subr.mxu0 0.0
  %665 = vmatpush1.msra.mxu0 0.0
  %666 = vmatprep.subr.mxu0 0.0
  %667 = vmatpush1.msra.mxu0 0.0
  %668 = vmatprep.subr.mxu0 0.0
  %669 = vmatpush1.msra.mxu0 0.0
  %670 = vmatprep.subr.mxu0 0.0
  %671 = vmatpush1.msra.mxu0 0.0
  %672 = vmatprep.subr.mxu0 0.0
  %673 = vmatpush1.msra.mxu0 0.0
  %674 = vmatprep.subr.mxu0 0.0
  %675 = vmatpush1.msra.mxu0 0.0
  %676 = vmatprep.subr.mxu0 0.0
  %677 = vmatpush1.msra.mxu0 0.0
  %678 = vmatprep.subr.mxu0 0.0
  %679 = vmatpush1.msra.mxu0 0.0
  %680 = vmatprep.subr.mxu0 0.0
  %681 = vmatpush1.msra.mxu0 0.0
  %682 = vmatprep.mubr.f32.mxu0 0.0
  %683 = vmatmul.mubr.f32.gmra.mrb[0].mxu0 %v616
  %v684 = vpop.f32.mrb[0].mxu0
  %v685 = vadd.f32 %v613, %v684
  %v686 = vpop.f32.mrb[0].mxu0
  %687 = vdwg.mxu0
  %v688 = vmul.f32 %v685, 1.442695
  %v689 = vpow.pop %v688
  %v690 = vmul.f32 %v246, %v689
  %v692 = vrot.slane %v685, 4
  %v694 = vadd.f32 %v690, %v692
  %v695 = vadd.f32 %v471, %v685
  %s696 = scalar_lea.vmem %s2, 96
  %v697 = vld [vmem:[%s696] sm:$0xff]
  %v698 = vld [vmem:[%s696 + $0x8] sm:$0xff]
  %v699 = vld [vmem:[%s696 + $0x10] sm:$0xff]
  %v700 = vld [vmem:[%s696 + $0x18] sm:$0xff]
  %s701 = scalar_lea.vmem %s3, 96
  %v702 = vld [vmem:[%s701] sm:$0xff]
  %v703 = vld [vmem:[%s701 + $0x8] sm:$0xff]
  %v704 = vld [vmem:[%s701 + $0x10] sm:$0xff]
  %v705 = vld [vmem:[%s701 + $0x18] sm:$0xff]
  %707 = vset.pattern.permute.xlu0 0
  %708 = vperm.xlu0 %707, %v702
  %v709 = vpop.permute.xlu0 %708
  %712 = vset.pattern.permute.xlu0 0
  %713 = vperm.xlu0 %712, %v703
  %v714 = vpop.permute.xlu0 %713
  %717 = vset.pattern.permute.xlu0 0
  %718 = vperm.xlu0 %717, %v704
  %v719 = vpop.permute.xlu0 %718
  %722 = vset.pattern.permute.xlu0 0
  %723 = vperm.xlu0 %722, %v705
  %v724 = vpop.permute.xlu0 %723
  %v727 = vsel %vm53, %v697, 0
  %v730 = vsel %vm53, %v698, 0
  %v733 = vsel %vm53, %v699, 0
  %v736 = vsel %vm53, %v700, 0
  %v739 = vsel %vm66, %v694, 0
  %741 = vmatprep.subr.mxu0 0.0
  %742 = vmatpush1.msra.mxu0 %v739
  %743 = vmatprep.subr.mxu0 0.0
  %744 = vmatpush1.msra.mxu0 0.0
  %745 = vmatprep.subr.mxu0 0.0
  %746 = vmatpush1.msra.mxu0 0.0
  %747 = vmatprep.subr.mxu0 0.0
  %748 = vmatpush1.msra.mxu0 0.0
  %749 = vmatprep.subr.mxu0 0.0
  %750 = vmatpush1.msra.mxu0 0.0
  %751 = vmatprep.subr.mxu0 0.0
  %752 = vmatpush1.msra.mxu0 0.0
  %753 = vmatprep.subr.mxu0 0.0
  %754 = vmatpush1.msra.mxu0 0.0
  %755 = vmatprep.subr.mxu0 0.0
  %756 = vmatpush1.msra.mxu0 0.0
  %757 = vmatprep.subr.mxu0 0.0
  %758 = vmatpush1.msra.mxu0 0.0
  %759 = vmatprep.subr.mxu0 0.0
  %760 = vmatpush1.msra.mxu0 0.0
  %761 = vmatprep.subr.mxu0 0.0
  %762 = vmatpush1.msra.mxu0 0.0
  %763 = vmatprep.subr.mxu0 0.0
  %764 = vmatpush1.msra.mxu0 0.0
  %765 = vmatprep.subr.mxu0 0.0
  %766 = vmatpush1.msra.mxu0 0.0
  %767 = vmatprep.subr.mxu0 0.0
  %768 = vmatpush1.msra.mxu0 0.0
  %769 = vmatprep.subr.mxu0 0.0
  %770 = vmatpush1.msra.mxu0 0.0
  %771 = vmatprep.subr.mxu0 0.0
  %772 = vmatpush1.msra.mxu0 0.0
  %773 = vmatprep.subr.mxu0 0.0
  %774 = vmatpush1.msra.mxu0 0.0
  %775 = vmatprep.subr.mxu0 0.0
  %776 = vmatpush1.msra.mxu0 0.0
  %777 = vmatprep.subr.mxu0 0.0
  %778 = vmatpush1.msra.mxu0 0.0
  %779 = vmatprep.subr.mxu0 0.0
  %780 = vmatpush1.msra.mxu0 0.0
  %781 = vmatprep.subr.mxu0 0.0
  %782 = vmatpush1.msra.mxu0 0.0
  %783 = vmatprep.subr.mxu0 0.0
  %784 = vmatpush1.msra.mxu0 0.0
  %785 = vmatprep.subr.mxu0 0.0
  %786 = vmatpush1.msra.mxu0 0.0
  %787 = vmatprep.subr.mxu0 0.0
  %788 = vmatpush1.msra.mxu0 0.0
  %789 = vmatprep.subr.mxu0 0.0
  %790 = vmatpush1.msra.mxu0 0.0
  %791 = vmatprep.subr.mxu0 0.0
  %792 = vmatpush1.msra.mxu0 0.0
  %793 = vmatprep.subr.mxu0 0.0
  %794 = vmatpush1.msra.mxu0 0.0
  %795 = vmatprep.subr.mxu0 0.0
  %796 = vmatpush1.msra.mxu0 0.0
  %797 = vmatprep.subr.mxu0 0.0
  %798 = vmatpush1.msra.mxu0 0.0
  %799 = vmatprep.subr.mxu0 0.0
  %800 = vmatpush1.msra.mxu0 0.0
  %801 = vmatprep.subr.mxu0 0.0
  %802 = vmatpush1.msra.mxu0 0.0
  %803 = vmatprep.subr.mxu0 0.0
  %804 = vmatpush1.msra.mxu0 0.0
  %805 = vmatprep.mubr.f32.mxu0 0.0
  %806 = vmatmul.mubr.f32.gmra.mrb[0].mxu0 %v727
  %v807 = vpop.f32.mrb[0].mxu0
  %v808 = vadd.f32 %v709, %v807
  %v809 = vpop.f32.mrb[0].mxu0
  %810 = vmatprep.mubr.f32.mxu0 0.0
  %811 = vmatmul.mubr.f32.gmra.mrb[0].mxu0 %v730
  %v812 = vpop.f32.mrb[0].mxu0
  %v813 = vadd.f32 %v714, %v812
  %v814 = vpop.f32.mrb[0].mxu0
  %815 = vmatprep.mubr.f32.mxu0 0.0
  %816 = vmatmul.mubr.f32.gmra.mrb[0].mxu0 %v733
  %v817 = vpop.f32.mrb[0].mxu0
  %v818 = vadd.f32 %v719, %v817
  %v819 = vpop.f32.mrb[0].mxu0
  %820 = vmatprep.mubr.f32.mxu0 0.0
  %821 = vmatmul.mubr.f32.gmra.mrb[0].mxu0 %v736
  %v822 = vpop.f32.mrb[0].mxu0
  %v823 = vadd.f32 %v724, %v822
  %v824 = vpop.f32.mrb[0].mxu0
  %825 = vdwg.mxu0
  %v826 = vtanh.pop %v808
  %v827 = vtanh.pop %v813
  %v828 = vtanh.pop %v818
  %v829 = vtanh.pop %v823
  %s830 = scalar_lea.vmem %s4, 24
  %v831 = vld [vmem:[%s830] sm:$0xff]
  %s832 = scalar_lea.vmem %s5, 24
  %v833 = vld [vmem:[%s832] sm:$0xff]
  %835 = vset.pattern.permute.xlu0 0
  %836 = vperm.xlu0 %835, %v833
  %v837 = vpop.permute.xlu0 %836
  %v840 = vsel %vm166, %v831, 0
  %842 = vmatprep.subr.mxu0 0.0
  %843 = vmatpush1.msra.mxu0 %v826
  %844 = vmatprep.subr.mxu0 0.0
  %845 = vmatpush1.msra.mxu0 %v827
  %846 = vmatprep.subr.mxu0 0.0
  %847 = vmatpush1.msra.mxu0 %v828
  %848 = vmatprep.subr.mxu0 0.0
  %849 = vmatpush1.msra.mxu0 %v829
  %850 = vmatprep.subr.mxu0 0.0
  %851 = vmatpush1.msra.mxu0 0.0
  %852 = vmatprep.subr.mxu0 0.0
  %853 = vmatpush1.msra.mxu0 0.0
  %854 = vmatprep.subr.mxu0 0.0
  %855 = vmatpush1.msra.mxu0 0.0
  %856 = vmatprep.subr.mxu0 0.0
  %857 = vmatpush1.msra.mxu0 0.0
  %858 = vmatprep.subr.mxu0 0.0
  %859 = vmatpush1.msra.mxu0 0.0
  %860 = vmatprep.subr.mxu0 0.0
  %861 = vmatpush1.msra.mxu0 0.0
  %862 = vmatprep.subr.mxu0 0.0
  %863 = vmatpush1.msra.mxu0 0.0
  %864 = vmatprep.subr.mxu0 0.0
  %865 = vmatpush1.msra.mxu0 0.0
  %866 = vmatprep.subr.mxu0 0.0
  %867 = vmatpush1.msra.mxu0 0.0
  %868 = vmatprep.subr.mxu0 0.0
  %869 = vmatpush1.msra.mxu0 0.0
  %870 = vmatprep.subr.mxu0 0.0
  %871 = vmatpush1.msra.mxu0 0.0
  %872 = vmatprep.subr.mxu0 0.0
  %873 = vmatpush1.msra.mxu0 0.0
  %874 = vmatprep.subr.mxu0 0.0
  %875 = vmatpush1.msra.mxu0 0.0
  %876 = vmatprep.subr.mxu0 0.0
  %877 = vmatpush1.msra.mxu0 0.0
  %878 = vmatprep.subr.mxu0 0.0
  %879 = vmatpush1.msra.mxu0 0.0
  %880 = vmatprep.subr.mxu0 0.0
  %881 = vmatpush1.msra.mxu0 0.0
  %882 = vmatprep.subr.mxu0 0.0
  %883 = vmatpush1.msra.mxu0 0.0
  %884 = vmatprep.subr.mxu0 0.0
  %885 = vmatpush1.msra.mxu0 0.0
  %886 = vmatprep.subr.mxu0 0.0
  %887 = vmatpush1.msra.mxu0 0.0
  %888 = vmatprep.subr.mxu0 0.0
  %889 = vmatpush1.msra.mxu0 0.0
  %890 = vmatprep.subr.mxu0 0.0
  %891 = vmatpush1.msra.mxu0 0.0
  %892 = vmatprep.subr.mxu0 0.0
  %893 = vmatpush1.msra.mxu0 0.0
  %894 = vmatprep.subr.mxu0 0.0
  %895 = vmatpush1.msra.mxu0 0.0
  %896 = vmatprep.subr.mxu0 0.0
  %897 = vmatpush1.msra.mxu0 0.0
  %898 = vmatprep.subr.mxu0 0.0
  %899 = vmatpush1.msra.mxu0 0.0
  %900 = vmatprep.subr.mxu0 0.0
  %901 = vmatpush1.msra.mxu0 0.0
  %902 = vmatprep.subr.mxu0 0.0
  %903 = vmatpush1.msra.mxu0 0.0
  %904 = vmatprep.subr.mxu0 0.0
  %905 = vmatpush1.msra.mxu0 0.0
  %906 = vmatprep.mubr.f32.mxu0 0.0
  %907 = vmatmul.mubr.f32.gmra.mrb[0].mxu0 %v840
  %v908 = vpop.f32.mrb[0].mxu0
  %v909 = vadd.f32 %v837, %v908
  %v910 = vpop.f32.mrb[0].mxu0
  %911 = vdwg.mxu0
  %v912 = vmul.f32 %v909, 1.442695
  %v913 = vpow.pop %v912
  %v914 = vmul.f32 %v470, %v913
  %v916 = vrot.slane %v909, 4
  %v918 = vadd.f32 %v914, %v916
  %v919 = vadd.f32 %v695, %v909
  %vm920 = vcmask 60416
  %v921 = vsel %vm920, %v919, 0.0
  %v922 = vrot.slane %v921, 4
  %v923 = vadd.f32 %v921, %v922
  %v924 = vrot.slane %v923, 2
  %v925 = vadd.f32 %v923, %v924
  %v926 = vrot.slane %v925, 1
  %v927 = vadd.f32 %v925, %v926
  %v928 = vmul.f32 %v918, %v918
  %v929 = vmul.f32 %v694, %v694
  %v930 = vadd.f32 %v928, %v929
  %v931 = vsel %vm920, %v930, 0.0
  %v932 = vrot.slane %v931, 4
  %v933 = vadd.f32 %v931, %v932
  %v934 = vrot.slane %v933, 2
  %v935 = vadd.f32 %v933, %v934
  %v936 = vrot.slane %v935, 1
  %v937 = vadd.f32 %v935, %v936
  %v938 = vmul.f32 %v937, -0.5
  %v939 = vsub.f32 %v938, 7.351508
  %v940 = vrot.slane %v694, 4
  %v942 = vsel %vm66, %v918, %v940
  %vm943 = vcmask 1040384
  %v944 = vsel %vm943, %v939, %v927
  %vm945 = vcmask 64512
  %946 = vst.msk [vmem:[%s6] sm:$0xff] %vm945, %v942
  %vm947 = vcmask 58368
  %948 = vst.msk [vmem:[%s6 + $0x8] sm:$0x3] %vm947, %v944
  // Predicated region
  $region26: #{tpu_custom_call.1} parent=0 // pred_check
    _
  $region27: #{tpu_custom_call.1} parent=0 // pred_check_branch
    %950 = sbr.rel (0) target = $region29
  $region28: #{tpu_custom_call.1} parent=0 // pred_region
    _
  $region29: #{tpu_custom_call.1} parent=0 // pred_fallthru
    _
  // Predicated region
  $region30: #{tpu_custom_call.1} parent=0 // pred_check
    _
  $region31: #{tpu_custom_call.1} parent=0 // pred_check_branch
    %952 = sbr.rel (0) target = $region33
  $region32: #{tpu_custom_call.1} parent=0 // pred_region
    _
  $region33: #{tpu_custom_call.1} parent=0 // pred_fallthru
    _

</llo_original>
